<compile_context>
chip_gen: v7x
topology: tpu7x:2x2x1
jax: 0.10.0
libtpu: 0.0.40
codegen_flags: <defaults>
</compile_context>

<pallas_src>
import random
import functools

import jax
import jax.numpy as jnp
from jax import lax
from jax.experimental import pallas as pl
from jax.experimental.pallas import tpu as pltpu

MAX_BUFFER_SIZE = 100000000


def _shift_lanes(xv, off):
    """y[..., p] = xv[..., p + off] if 0 <= p + off < P else 0, for static `off`.

    Pure lane-axis shift with explicit zero fill (the zero fill is exactly the
    SAME padding for the H boundary).
    """
    if off == 0:
        return xv
    pad = jnp.zeros(xv.shape[:-1] + (abs(off),), xv.dtype)
    if off > 0:
        return jnp.concatenate([xv[..., off:], pad], axis=-1)
    return jnp.concatenate([pad, xv[..., :off]], axis=-1)


def _conv3x3_kernel(x_ref, w_ref, o_ref, *, img_w):
    # x_ref: (BT, CIN, H*W)  batch tile of images, channels in sublanes, spatial in lanes
    # w_ref: (COUT, K_PAD)   im2col weight (bias column folded in, zero pad cols)
    # o_ref: (BT, COUT, H*W) output block (lane-dense: last dim = H*W)
    bt, cin, hw = x_ref.shape
    k_pad = w_ref.shape[1]
    n_ones = k_pad - 9 * cin  # >= 1; row 9*cin hits the bias column, rest hit zero columns

    # W-boundary masks from ONE (1, hw) iota row (broadcast over sublanes in the where);
    # the H boundary is already handled by the zero fill of the lane shifts.
    col = lax.broadcasted_iota(jnp.int32, (1, hw), 1) % img_w
    mask_wpos = col < (img_w - 1)   # neighbour at w+1 exists
    mask_wneg = col >= 1            # neighbour at w-1 exists

    ones_rows = jnp.ones((n_ones, hw), jnp.float32)
    wv = w_ref[...]  # resident (COUT, K_PAD), already in the dot dtype

    # Static unroll over the batch tile: amortizes per-grid-step pipeline
    # overhead; each image is one fused (COUT, K_PAD) @ (K_PAD, HW) MXU matmul.
    for b in range(bt):
        xv = x_ref[b]  # (CIN, HW) f32 value
        taps = []
        for kh in range(3):
            dh = kh - 1
            for kw in range(3):
                dw = kw - 1
                tap = _shift_lanes(xv, dh * img_w + dw)
                if dw > 0:
                    tap = jnp.where(mask_wpos, tap, 0.0)
                elif dw < 0:
                    tap = jnp.where(mask_wneg, tap, 0.0)
                taps.append(tap)
        # im2col patch as a value: no scratch, no memset, no masked partial stores.
        patch = jnp.concatenate(taps + [ones_rows], axis=0)          # (K_PAD, HW) f32
        patch = patch.astype(wv.dtype)                               # bf16 (or f32) MXU operands
        acc = jnp.dot(wv, patch, preferred_element_type=jnp.float32)  # (COUT, HW) f32 acc
        o_ref[b] = acc.astype(o_ref.dtype)


def conv3x3_pallas(x_flat, w_packed, img_w, *, batch_tile=None):
    """x_flat: (N, CIN, H*W) f32; w_packed: (COUT, K_PAD) with bias folded in."""
    n, cin, hw = x_flat.shape
    cout, k_pad = w_packed.shape
    if batch_tile is None:
        # Keep >= 2 balanced "parallel" grid steps so both v7x TensorCores work,
        # while batching as many images as possible per step to amortize the
        # per-step pipeline overhead (~0.35 us).
        batch_tile = max(1, n // 2)
    while n % batch_tile:  # pick a divisor of N
        batch_tile -= 1
    kernel = functools.partial(_conv3x3_kernel, img_w=img_w)
    return pl.pallas_call(
        kernel,
        out_shape=jax.ShapeDtypeStruct((n, cout, hw), x_flat.dtype),
        grid=(n // batch_tile,),
        in_specs=[
            pl.BlockSpec((batch_tile, cin, hw), lambda i: (i, 0, 0)),
            pl.BlockSpec((cout, k_pad), lambda i: (0, 0)),   # resident weight
        ],
        out_specs=pl.BlockSpec((batch_tile, cout, hw), lambda i: (i, 0, 0)),
        compiler_params=pltpu.CompilerParams(
            dimension_semantics=("parallel",)),
    )(x_flat, w_packed)


# ----------------------------------------------------------------------------
# Inner "model": deterministic 3x3 Conv2d(Cin -> Cout) with bias, NCHW API.
# ----------------------------------------------------------------------------
class SimpleConvModel:
    def __init__(self, cin=4, cout=8, key=jax.random.PRNGKey(0),
                 dot_dtype=jnp.bfloat16):
        kw_, kb_ = jax.random.split(key)
        self.cin = cin
        self.cout = cout
        self.dot_dtype = dot_dtype
        # PyTorch-style weight layout (Cout, Cin, kh, kw) kept for the reference check.
        self.weight_oihw = jax.random.normal(kw_, (cout, cin, 3, 3), jnp.float32) * 0.1
        self.bias = jax.random.normal(kb_, (cout,), jnp.float32) * 0.1

        # Weight prep (host side, once): im2col layout (Cout, 9*Cin), bias as an
        # extra column (multiplied by the kernel's ones rows), zero-padded only
        # up to the next multiple of 8 (perf item 2: no 128-deep dead MXU work).
        k = 9 * cin
        k_pad = ((k + 1 + 7) // 8) * 8   # 40 for cin=4
        # row r = (kh*3 + kw)*Cin + c  holds  W[cout, c, kh, kw]
        w_rows = jnp.transpose(self.weight_oihw, (2, 3, 1, 0)).reshape(k, cout)
        self.w_packed = jnp.concatenate(
            [w_rows.T, self.bias[:, None],
             jnp.zeros((cout, k_pad - k - 1), jnp.float32)],
            axis=1).astype(dot_dtype)
        # TODO(synk): for cin~192 (real compressai), tile K (9*cin+1 rows) over a
        # reduction grid axis with a VMEM accumulator instead of one wide patch.

    def __call__(self, x_nchw):
        n, c, h, w = x_nchw.shape
        assert c == self.cin
        # Free reshapes only: NCHW stays NCHW; spatial is flattened onto the
        # lane axis.  No transposes, no jnp.pad -> no extra HBM passes.
        x_flat = x_nchw.reshape(n, c, h * w)
        y_flat = conv3x3_pallas(x_flat, self.w_packed, w)
        return y_flat.reshape(n, self.cout, h, w)


# ----------------------------------------------------------------------------
# InputLoggerWrapper: host-side logging side effect + device forward.
# ----------------------------------------------------------------------------
class InputLoggerWrapper:
    def __init__(self, model):
        self.model = model
        self.inputs = []
        self.counter = 0
        self.freeze_pos = 0
        self.freeze_idx = 0

    def forward(self, *args, **kwargs):
        # TODO(synk): host-side Python-list logging (torch.no_grad ring buffer)
        # has no Pallas equivalent; reproduced faithfully on the host.
        self.append_input((args, kwargs))
        return self.model(*args, **kwargs)

    __call__ = forward

    def forward_part1(self, *args, **kwargs):
        self.append_input((args, kwargs))
        return self.model.forward_part1(*args, **kwargs)

    def forward_part2(self, *args, **kwargs):
        return self.model.forward_part2(*args, **kwargs)

    def append_input(self, inp):
        if len(self.inputs) == 5000:
            print("Reached 5000 inputs!")
        if len(self.inputs) < MAX_BUFFER_SIZE:
            self.inputs.append(inp)
        else:
            self.counter += 1
            if self.counter == MAX_BUFFER_SIZE:
                self.counter = 0
                if self.freeze_idx < 9:
                    self.freeze_idx += 1
                    self.freeze_pos = int(float(self.freeze_idx / 10) * MAX_BUFFER_SIZE)
                    print(self.freeze_pos)
            random_index = random.randint(self.freeze_pos, len(self.inputs) - 1)
            self.inputs[random_index] = inp

    def get_logged_inputs(self):
        return self.inputs

    def clear_logged_inputs(self):
        self.inputs = []


if __name__ == "__main__":
    random.seed(0)
    key = jax.random.PRNGKey(0)
    k_x, k_m = jax.random.split(key)

    # Small NCHW input consistent with a compressai conv model.
    x = jax.random.normal(k_x, (2, 4, 16, 16), jnp.float32)

    # Default (perf items 5/6): bf16 MXU operands, f32 accumulation.
    model = SimpleConvModel(cin=4, cout=8, key=k_m, dot_dtype=jnp.bfloat16)
    wrapper = InputLoggerWrapper(model)

    y = wrapper(x)
    y = jax.block_until_ready(y)

    # Reference check against XLA's conv (NCHW / OIHW), SAME padding.
    y_ref = lax.conv_general_dilated(
        x, model.weight_oihw, window_strides=(1, 1), padding="SAME",
        dimension_numbers=("NCHW", "OIHW", "NCHW"),
    ) + model.bias[None, :, None, None]

    assert y.shape == (2, 8, 16, 16)
    assert len(wrapper.get_logged_inputs()) == 1
    # bf16 operands -> loosened tolerance (per perf review correctness note).
    assert jnp.allclose(y, y_ref, atol=3e-2, rtol=3e-2), \
        float(jnp.max(jnp.abs(y - y_ref)))

    # Strict f32-operand path (same weights): pins down exact kernel correctness.
    model_f32 = SimpleConvModel(cin=4, cout=8, key=k_m, dot_dtype=jnp.float32)
    y32 = jax.block_until_ready(model_f32(x))
    assert jnp.allclose(y32, y_ref, atol=1e-4, rtol=1e-4), \
        float(jnp.max(jnp.abs(y32 - y_ref)))

    print("KERNEL_OK")
</pallas_src>

<mosaic_0001>
module attributes {stable_mosaic.version = 11 : i64} {
  func.func @_conv3x3_kernel(%arg0: i32, %arg1: memref<1x4x256xf32, #tpu.memory_space<vmem>>, %arg2: memref<8x40xbf16, #tpu.memory_space<vmem>>, %arg3: memref<1x8x256xf32, #tpu.memory_space<vmem>>) attributes {dimension_semantics = [#tpu.dimension_semantics<parallel>], iteration_bounds = array<i64: 2>, scalar_prefetch = 0 : i64, scratch_operands = 0 : i64, tpu.core_type = #tpu.core_type<tc>, window_params = [{transform_indices = @transform_0, window_bounds = array<i64: 1, 4, 256>}, {pipeline_mode = #tpu.pipeline_mode<synchronous>, transform_indices = @transform_1, window_bounds = array<i64: 8, 40>}, {transform_indices = @transform_2, window_bounds = array<i64: 1, 8, 256>}]} {
    %0 = tpu.iota {dimensions = array<i32: 1>} : vector<1x256xi32>
    %c16_i32 = arith.constant 16 : i32
    %c0_i32 = arith.constant 0 : i32
    %1 = arith.cmpi eq, %c16_i32, %c0_i32 : i32
    %c1_i32 = arith.constant 1 : i32
    %2 = arith.select %1, %c1_i32, %c16_i32 : i32
    %3 = vector.broadcast %2 : i32 to vector<1x256xi32>
    %4 = arith.remsi %0, %3 : vector<1x256xi32>
    %c0_i32_0 = arith.constant 0 : i32
    %5 = vector.broadcast %c0_i32_0 : i32 to vector<1x256xi32>
    %6 = arith.cmpi ne, %4, %5 : vector<1x256xi32>
    %c0_i32_1 = arith.constant 0 : i32
    %7 = vector.broadcast %c0_i32_1 : i32 to vector<1x256xi32>
    %8 = arith.cmpi slt, %4, %7 : vector<1x256xi32>
    %c0_i32_2 = arith.constant 0 : i32
    %9 = arith.cmpi slt, %2, %c0_i32_2 : i32
    %10 = vector.broadcast %9 : i1 to vector<1x256xi1>
    %11 = vector.broadcast %10 : vector<1x256xi1> to vector<1x256xi1>
    %12 = arith.xori %8, %11 : vector<1x256xi1>
    %13 = arith.andi %12, %6 : vector<1x256xi1>
    %14 = vector.broadcast %2 : i32 to vector<1x256xi32>
    %15 = arith.addi %4, %14 : vector<1x256xi32>
    %16 = arith.select %13, %15, %4 : vector<1x256xi1>, vector<1x256xi32>
    %c15_i32 = arith.constant 15 : i32
    %17 = vector.broadcast %c15_i32 : i32 to vector<1x256xi32>
    %18 = arith.cmpi slt, %16, %17 : vector<1x256xi32>
    %c1_i32_3 = arith.constant 1 : i32
    %19 = vector.broadcast %c1_i32_3 : i32 to vector<1x256xi32>
    %20 = arith.cmpi sge, %16, %19 : vector<1x256xi32>
    %cst = arith.constant 1.000000e+00 : f32
    %21 = vector.broadcast %cst : f32 to vector<4x256xf32>
    %c0 = arith.constant 0 : index
    %c0_4 = arith.constant 0 : index
    %22 = vector.load %arg2[%c0, %c0_4] : memref<8x40xbf16, #tpu.memory_space<vmem>>, vector<8x40xbf16>
    %c0_5 = arith.constant 0 : index
    %c0_6 = arith.constant 0 : index
    %c0_7 = arith.constant 0 : index
    %23 = vector.load %arg1[%c0_5, %c0_6, %c0_7] : memref<1x4x256xf32, #tpu.memory_space<vmem>>, vector<1x4x256xf32>
    %24 = vector.shape_cast %23 : vector<1x4x256xf32> to vector<4x256xf32>
    %cst_8 = arith.constant 0.000000e+00 : f32
    %25 = vector.broadcast %cst_8 : f32 to vector<4x17xf32>
    %26 = vector.extract_strided_slice %24 {offsets = [0, 0], sizes = [4, 239], strides = [1, 1]} : vector<4x256xf32> to vector<4x239xf32>
    %27 = tpu.concatenate %25, %26 in 1 : vector<4x17xf32>, vector<4x239xf32> -> vector<4x256xf32>
    %cst_9 = arith.constant 0.000000e+00 : f32
    %28 = vector.shape_cast %20 : vector<1x256xi1> to vector<1x256xi1>
    %29 = vector.broadcast %28 : vector<1x256xi1> to vector<4x256xi1>
    %30 = vector.broadcast %cst_9 : f32 to vector<4x256xf32>
    %31 = arith.select %29, %27, %30 : vector<4x256xi1>, vector<4x256xf32>
    %cst_10 = arith.constant 0.000000e+00 : f32
    %32 = vector.broadcast %cst_10 : f32 to vector<4x16xf32>
    %33 = vector.extract_strided_slice %24 {offsets = [0, 0], sizes = [4, 240], strides = [1, 1]} : vector<4x256xf32> to vector<4x240xf32>
    %34 = tpu.concatenate %32, %33 in 1 : vector<4x16xf32>, vector<4x240xf32> -> vector<4x256xf32>
    %cst_11 = arith.constant 0.000000e+00 : f32
    %35 = vector.broadcast %cst_11 : f32 to vector<4x15xf32>
    %36 = vector.extract_strided_slice %24 {offsets = [0, 0], sizes = [4, 241], strides = [1, 1]} : vector<4x256xf32> to vector<4x241xf32>
    %37 = tpu.concatenate %35, %36 in 1 : vector<4x15xf32>, vector<4x241xf32> -> vector<4x256xf32>
    %cst_12 = arith.constant 0.000000e+00 : f32
    %38 = vector.shape_cast %18 : vector<1x256xi1> to vector<1x256xi1>
    %39 = vector.broadcast %38 : vector<1x256xi1> to vector<4x256xi1>
    %40 = vector.broadcast %cst_12 : f32 to vector<4x256xf32>
    %41 = arith.select %39, %37, %40 : vector<4x256xi1>, vector<4x256xf32>
    %cst_13 = arith.constant 0.000000e+00 : f32
    %42 = vector.broadcast %cst_13 : f32 to vector<4x1xf32>
    %43 = vector.extract_strided_slice %24 {offsets = [0, 0], sizes = [4, 255], strides = [1, 1]} : vector<4x256xf32> to vector<4x255xf32>
    %44 = tpu.concatenate %42, %43 in 1 : vector<4x1xf32>, vector<4x255xf32> -> vector<4x256xf32>
    %cst_14 = arith.constant 0.000000e+00 : f32
    %45 = vector.shape_cast %20 : vector<1x256xi1> to vector<1x256xi1>
    %46 = vector.broadcast %45 : vector<1x256xi1> to vector<4x256xi1>
    %47 = vector.broadcast %cst_14 : f32 to vector<4x256xf32>
    %48 = arith.select %46, %44, %47 : vector<4x256xi1>, vector<4x256xf32>
    %cst_15 = arith.constant 0.000000e+00 : f32
    %49 = vector.broadcast %cst_15 : f32 to vector<4x1xf32>
    %50 = vector.extract_strided_slice %24 {offsets = [0, 1], sizes = [4, 255], strides = [1, 1]} : vector<4x256xf32> to vector<4x255xf32>
    %51 = tpu.concatenate %50, %49 in 1 : vector<4x255xf32>, vector<4x1xf32> -> vector<4x256xf32>
    %cst_16 = arith.constant 0.000000e+00 : f32
    %52 = vector.shape_cast %18 : vector<1x256xi1> to vector<1x256xi1>
    %53 = vector.broadcast %52 : vector<1x256xi1> to vector<4x256xi1>
    %54 = vector.broadcast %cst_16 : f32 to vector<4x256xf32>
    %55 = arith.select %53, %51, %54 : vector<4x256xi1>, vector<4x256xf32>
    %cst_17 = arith.constant 0.000000e+00 : f32
    %56 = vector.broadcast %cst_17 : f32 to vector<4x15xf32>
    %57 = vector.extract_strided_slice %24 {offsets = [0, 15], sizes = [4, 241], strides = [1, 1]} : vector<4x256xf32> to vector<4x241xf32>
    %58 = tpu.concatenate %57, %56 in 1 : vector<4x241xf32>, vector<4x15xf32> -> vector<4x256xf32>
    %cst_18 = arith.constant 0.000000e+00 : f32
    %59 = vector.shape_cast %20 : vector<1x256xi1> to vector<1x256xi1>
    %60 = vector.broadcast %59 : vector<1x256xi1> to vector<4x256xi1>
    %61 = vector.broadcast %cst_18 : f32 to vector<4x256xf32>
    %62 = arith.select %60, %58, %61 : vector<4x256xi1>, vector<4x256xf32>
    %cst_19 = arith.constant 0.000000e+00 : f32
    %63 = vector.broadcast %cst_19 : f32 to vector<4x16xf32>
    %64 = vector.extract_strided_slice %24 {offsets = [0, 16], sizes = [4, 240], strides = [1, 1]} : vector<4x256xf32> to vector<4x240xf32>
    %65 = tpu.concatenate %64, %63 in 1 : vector<4x240xf32>, vector<4x16xf32> -> vector<4x256xf32>
    %cst_20 = arith.constant 0.000000e+00 : f32
    %66 = vector.broadcast %cst_20 : f32 to vector<4x17xf32>
    %67 = vector.extract_strided_slice %24 {offsets = [0, 17], sizes = [4, 239], strides = [1, 1]} : vector<4x256xf32> to vector<4x239xf32>
    %68 = tpu.concatenate %67, %66 in 1 : vector<4x239xf32>, vector<4x17xf32> -> vector<4x256xf32>
    %cst_21 = arith.constant 0.000000e+00 : f32
    %69 = vector.shape_cast %18 : vector<1x256xi1> to vector<1x256xi1>
    %70 = vector.broadcast %69 : vector<1x256xi1> to vector<4x256xi1>
    %71 = vector.broadcast %cst_21 : f32 to vector<4x256xf32>
    %72 = arith.select %70, %68, %71 : vector<4x256xi1>, vector<4x256xf32>
    %73 = tpu.concatenate %31, %34, %41, %48, %24, %55, %62, %65, %72, %21 in 0 : vector<4x256xf32>, vector<4x256xf32>, vector<4x256xf32>, vector<4x256xf32>, vector<4x256xf32>, vector<4x256xf32>, vector<4x256xf32>, vector<4x256xf32>, vector<4x256xf32>, vector<4x256xf32> -> vector<40x256xf32>
    %74 = arith.truncf %73 : vector<40x256xf32> to vector<40x256xbf16>
    %cst_22 = arith.constant dense<0.000000e+00> : vector<8x256xf32>
    %75 = tpu.matmul %22, %74, %cst_22 {dimension_numbers = #tpu.dot_dimension_numbers<[1], [0], [0], [1], [0, 0, 1, 1], [], []>} : vector<8x40xbf16>, vector<40x256xbf16>, vector<8x256xf32> -> vector<8x256xf32>
    %c0_23 = arith.constant 0 : index
    %c0_24 = arith.constant 0 : index
    %c0_25 = arith.constant 0 : index
    %76 = vector.load %arg3[%c0_23, %c0_24, %c0_25] : memref<1x8x256xf32, #tpu.memory_space<vmem>>, vector<1x8x256xf32>
    %77 = vector.shape_cast %76 : vector<1x8x256xf32> to vector<8x256xf32>
    %78 = vector.shape_cast %75 : vector<8x256xf32> to vector<1x8x256xf32>
    tpu.vector_store %arg3[%c0_23, %c0_24, %c0_25], %78 {strides = array<i32>} : memref<1x8x256xf32, #tpu.memory_space<vmem>>, vector<1x8x256xf32>,
    return
  }
  func.func @transform_0(%arg0: i32) -> (i32, i32, i32) {
    %c0_i32 = arith.constant 0 : i32
    %c0_i32_0 = arith.constant 0 : i32
    %c0_i32_1 = arith.constant 0 : i32
    return %arg0, %c0_i32, %c0_i32_0 : i32, i32, i32
  }
  func.func @transform_1(%arg0: i32) -> (i32, i32) {
    %c0_i32 = arith.constant 0 : i32
    %c0_i32_0 = arith.constant 0 : i32
    %c0_i32_1 = arith.constant 0 : i32
    return %c0_i32, %c0_i32_0 : i32, i32
  }
  func.func @transform_2(%arg0: i32) -> (i32, i32, i32) {
    %c0_i32 = arith.constant 0 : i32
    %c0_i32_0 = arith.constant 0 : i32
    %c0_i32_1 = arith.constant 0 : i32
    return %arg0, %c0_i32, %c0_i32_0 : i32, i32, i32
  }
}

</mosaic_0001>

<llo_original>
// kernel: tpu_custom_call.1
$region0: #{tpu_custom_call.1}
  #allocation0 [shape = 'u32[]', space=smem, size = 0x4, offset = 0x4, fixed_abs, tag = 'smem constant byte address 0x4 - core index']
  #allocation1 [shape = 'u32[144,128]{1,0:T(1,128)}', space=vmem, size = 0x12000, scoped, tag = 'internal scratch']
  %s0 = inlined_call_operand.hbm [shape: f32[2,4,256], index: 0, kind: input, shape index: {}]
  %s1 = inlined_call_operand.hbm [shape: bf16[8,40], index: 1, kind: input, shape index: {}]
  %s2 = inlined_call_operand.hbm [shape: f32[2,8,256], index: 2, kind: output, shape index: {}]
  %s3 = sld [smem:[#allocation0]]
  $region49: #{tpu_custom_call.1} parent=0
    _
  %s5 = ssub.s32 1, %s3
  %s6 = scalar_select 0, %s5, %s3
  $region1: #{tpu_custom_call.1} parent=0
    #allocation2 [shape = 'u8[8192]{0}', space=vmem, size = 0x2000, scoped, tag = 'input window, operand 0']
    #allocation3 [shape = 's32[2]{0}', space=sflag, size = 0x8, scoped, tag = 'scoped memory for tpu_custom_call.1']
    #allocation4 [shape = 's32[2]{0}', space=sflag, size = 0x8, scoped, tag = 'scoped memory for tpu_custom_call.1']
    #allocation5 [shape = 'u8[2048]{0}', space=vmem, size = 0x800, scoped, tag = 'input window, operand 1, single buffered']
    #allocation6 [shape = 's32[1]{0}', space=sflag, size = 0x4, scoped, tag = 'scoped memory for tpu_custom_call.1']
    #allocation7 [shape = 'u8[16384]{0}', space=vmem, size = 0x4000, scoped, tag = 'output window, operand 0']
    %7 = vsyncpa [#allocation3], 0
    %s8 = scalar_lea.sflag [#allocation3], 1
    %9 = vsyncpa %s8, 0
    %10 = vsyncpa [#allocation6], 0
    %11 = vsyncpa [#allocation4], 0
    %s12 = scalar_lea.sflag [#allocation4], 1
    %13 = vsyncpa %s12, 0
    loop: start=0, step=1, limit=4
    $region2: #{tpu_custom_call.1} parent=1 // loop_pre_header
      _
    $region3: #{tpu_custom_call.1} parent=1 // loop_header
      %s15 = sphi 0, %s19
      %p16 = scmp.ge.s32.totalorder %s15, 4
      %s25 = sphi 0, %s27
      %s28 = sphi 0, %s25
      %s29 = sphi 0, %s28
      %s45 = sphi 0, %s29
      %s49 = sphi 0, %s49
      %s51 = sphi 0, %s49
      %s52 = sphi 0, %s51
      %s66 = sphi 0, %s52
      %s72 = sphi 0, %s74
      %s75 = sphi 0, %s72
      %s76 = sphi 0, %s75
      %s92 = sphi 0, %s76
    $region4: #{tpu_custom_call.1} parent=1 // loop_header_branch
      %18 = sbr.rel (%p16) target = $region8
    $region5: #{tpu_custom_call.1} parent=1 // loop_body
      %s20 = ssub.s32 %s15, 1
      %s21 = ssub.s32 %s15, 2
      %s22 = sadd.s32 %s15, 1
      %s23 = ssub.s32 %s15, %s22
      %p24 = scmp.eq.s32.totalorder %s23, 0
      %s26 = sadd.s32 %s25, 1
      %s27 = scalar_select %p24, %s25, %s26
      %p30 = pneg %p24
      %p31 = scmp.eq.s32.totalorder %s15, 1
      %p32 = por %p30, %p31
      %p33 = scmp.ne.s32.totalorder %s25, %s28
      %p34 = scmp.eq.s32.totalorder %s15, 0
      %p35 = por %p33, %p34
      %p36 = scmp.ne.s32.totalorder %s25, %s28
      %p37 = scmp.eq.s32.totalorder %s20, 1
      %p38 = por %p36, %p37
      %p39 = scmp.ne.s32.totalorder %s28, %s29
      %p40 = scmp.eq.s32.totalorder %s20, 0
      %p41 = por %p39, %p40
      %p42 = scmp.ne.s32.totalorder %s28, %s29
      %p43 = scmp.eq.s32.totalorder %s21, 1
      %p44 = por %p42, %p43
      %p46 = scmp.ne.s32.totalorder %s29, %s45
      %p47 = scmp.eq.s32.totalorder %s21, 0
      %p48 = por %p46, %p47
      %s50 = sadd.s32 %s49, 1
      %p53 = scmp.eq.s32.totalorder %s15, 1
      %p54 = scmp.ne.s32.totalorder %s49, %s51
      %p55 = scmp.eq.s32.totalorder %s15, 0
      %p56 = por %p54, %p55
      %p57 = scmp.ne.s32.totalorder %s49, %s51
      %p58 = scmp.eq.s32.totalorder %s20, 1
      %p59 = por %p57, %p58
      %p60 = scmp.ne.s32.totalorder %s51, %s52
      %p61 = scmp.eq.s32.totalorder %s20, 0
      %p62 = por %p60, %p61
      %p63 = scmp.ne.s32.totalorder %s51, %s52
      %p64 = scmp.eq.s32.totalorder %s21, 1
      %p65 = por %p63, %p64
      %p67 = scmp.ne.s32.totalorder %s52, %s66
      %p68 = scmp.eq.s32.totalorder %s21, 0
      %p69 = por %p67, %p68
      %s70 = ssub.s32 %s15, %s22
      %p71 = scmp.eq.s32.totalorder %s70, 0
      %s73 = sadd.s32 %s72, 1
      %s74 = scalar_select %p71, %s72, %s73
      %p77 = pneg %p71
      %p78 = scmp.eq.s32.totalorder %s15, 1
      %p79 = por %p77, %p78
      %p80 = scmp.ne.s32.totalorder %s72, %s75
      %p81 = scmp.eq.s32.totalorder %s15, 0
      %p82 = por %p80, %p81
      %p83 = scmp.ne.s32.totalorder %s72, %s75
      %p84 = scmp.eq.s32.totalorder %s20, 1
      %p85 = por %p83, %p84
      %p86 = scmp.ne.s32.totalorder %s75, %s76
      %p87 = scmp.eq.s32.totalorder %s20, 0
      %p88 = por %p86, %p87
      %p89 = scmp.ne.s32.totalorder %s75, %s76
      %p90 = scmp.eq.s32.totalorder %s21, 1
      %p91 = por %p89, %p90
      %p93 = scmp.ne.s32.totalorder %s76, %s92
      %p94 = scmp.eq.s32.totalorder %s21, 0
      %p95 = por %p93, %p94
      %p96 = scmp.le.s32.totalorder 1, %s15
      %p97 = scmp.lt.s32.totalorder %s15, 3
      %p98 = pnand %p96, %p97
      %p99 = pneg %p98
      // Predicated region
      $region9: #{tpu_custom_call.1} parent=5 // pred_check
        _
      $region10: #{tpu_custom_call.1} parent=5 // pred_check_branch
        %101 = sbr.rel (%p98) target = $region12
      $region11: #{tpu_custom_call.1} parent=5 // pred_region
        %s102 = ssub.s32 %s15, 1
        // Predicated region
        $region13: #{tpu_custom_call.1} parent=11 // pred_check
          %p103 = pneg %p62
        $region14: #{tpu_custom_call.1} parent=11 // pred_check_branch
          %105 = sbr.rel (%p103) target = $region16
        $region15: #{tpu_custom_call.1} parent=11 // pred_region
          %s107 = ssub.s32 64, 64
          %108 = vsyncadd [#allocation6], %s107
          %s110 = sshll.u32 [#allocation5], 4
          %s111 = int_to_ptr.vmem [resolvable:$true] %s110
          %113 = dma.hbm_to_vmem [thread:$0]  %s1, 64, %s111, [#allocation6]
        $region16: #{tpu_custom_call.1} parent=11 // pred_fallthru
          _
      $region12: #{tpu_custom_call.1} parent=5 // pred_fallthru
        _
      %p114 = scmp.lt.s32.totalorder %s15, 2
      // Predicated region
      $region17: #{tpu_custom_call.1} parent=5 // pred_check
        %p115 = pneg %p114
      $region18: #{tpu_custom_call.1} parent=5 // pred_check_branch
        %117 = sbr.rel (%p115) target = $region20
      $region19: #{tpu_custom_call.1} parent=5 // pred_region
        // Predicated region
        $region21: #{tpu_custom_call.1} parent=19 // pred_check
          %p118 = pneg %p35
        $region22: #{tpu_custom_call.1} parent=19 // pred_check_branch
          %120 = sbr.rel (%p118) target = $region24
        $region23: #{tpu_custom_call.1} parent=19 // pred_region
          %s121 = sand.u32 %s25, 1
          %s122 = scalar_lea.sflag [#allocation3], %s121
          %s123 = sand.u32 %s25, 1
          %s124 = smul.addr %s123, 8
          %s125 = scalar_lea.vmem [#allocation2], %s124
          %s127 = ssub.s32 128, 128
          %128 = vsyncadd %s122, %s127
          %s129 = smul.addr %s15, 2
          %s130 = smul.addr %s129, 64
          %s131 = scalar_lea.hbm %s0, %s130
          %s133 = sshll.u32 %s125, 4
          %s134 = int_to_ptr.vmem [resolvable:$true] %s133
          %136 = dma.hbm_to_vmem [thread:$0]  %s131, 128, %s134, %s122
        $region24: #{tpu_custom_call.1} parent=19 // pred_fallthru
          _
      $region20: #{tpu_custom_call.1} parent=5 // pred_fallthru
        _
      %p137 = scmp.le.s32.totalorder 1, %s15
      %p138 = scmp.lt.s32.totalorder %s15, 3
      %p139 = pnand %p137, %p138
      %p140 = pneg %p139
      // Predicated region
      $region25: #{tpu_custom_call.1} parent=5 // pred_check
        _
      $region26: #{tpu_custom_call.1} parent=5 // pred_check_branch
        %142 = sbr.rel (%p139) target = $region28
      $region27: #{tpu_custom_call.1} parent=5 // pred_region
        %s143 = ssub.s32 %s15, 1
        %s144 = sand.u32 %s28, 1
        %s145 = scalar_lea.sflag [#allocation3], %s144
        %s146 = sand.u32 %s28, 1
        %s147 = smul.addr %s146, 8
        %s148 = scalar_lea.vmem [#allocation2], %s147
        // Predicated region
        $region29: #{tpu_custom_call.1} parent=27 // pred_check
          %p149 = pneg %p41
        $region30: #{tpu_custom_call.1} parent=27 // pred_check_branch
          %151 = sbr.rel (%p149) target = $region32
        $region31: #{tpu_custom_call.1} parent=27 // pred_region
          %152 = dma.done %s145, 128
        $region32: #{tpu_custom_call.1} parent=27 // pred_fallthru
          _
        // Predicated region
        $region33: #{tpu_custom_call.1} parent=27 // pred_check
          %p153 = pneg %p62
        $region34: #{tpu_custom_call.1} parent=27 // pred_check_branch
          %155 = sbr.rel (%p153) target = $region36
        $region35: #{tpu_custom_call.1} parent=27 // pred_region
          %156 = dma.done [#allocation6], 64
        $region36: #{tpu_custom_call.1} parent=27 // pred_fallthru
          _
        %s157 = sand.u32 %s28, 1
        %s158 = scalar_lea.sflag [#allocation3], %s157
        %s159 = sand.u32 %s28, 1
        %s160 = smul.addr %s159, 8
        %s161 = scalar_lea.vmem [#allocation2], %s160
        %p162 = pneg %p41
        %p163 = pneg %p38
        %p164 = pneg %p62
        %p165 = pneg %p59
        %p166 = pneg %p88
        %p167 = pneg %p85
        %s168 = sand.u32 %s75, 1
        %s169 = scalar_lea.sflag [#allocation4], %s168
        %s170 = sand.u32 %s75, 1
        %s171 = smul.addr %s170, 16
        %s172 = scalar_lea.vmem [#allocation7], %s171
        %v174 = vlaneseq
        %v175 = vand.u32 %v174, 127
        %v176 = vadd.s32 %v175, 128
        %vm177 = vcmp.lt.s32.totalorder %v175, 0
        %v178 = vsub.s32 0, %v175
        %v179 = vsel %vm177, %v178, %v175
        %v180 = vshrl.u32 %v179, 4
        %v181 = vand.u32 %v179, 15
        %v182 = vsub.s32 0, %v181
        %v183 = vsel %vm177, %v182, %v181
        %vm184 = vcmp.lt.s32.totalorder %v176, 0
        %v185 = vsub.s32 0, %v176
        %v186 = vsel %vm184, %v185, %v176
        %v187 = vshrl.u32 %v186, 4
        %v188 = vand.u32 %v186, 15
        %v189 = vsub.s32 0, %v188
        %v190 = vsel %vm184, %v189, %v188
        %vm191 = vcmp.ne.s32.totalorder %v183, 0
        %vm192 = vcmp.ne.s32.totalorder %v190, 0
        %vm193 = vcmp.lt.s32.totalorder %v183, 0
        %vm194 = vcmp.lt.s32.totalorder %v190, 0
        %vm195 = vmand %vm193, %vm191
        %vm196 = vmand %vm194, %vm192
        %v197 = vadd.s32 %v183, 16
        %v198 = vadd.s32 %v190, 16
        %v199 = vsel %vm195, %v197, %v183
        %v200 = vsel %vm196, %v198, %v190
        %vm201 = vcmp.lt.s32.totalorder %v199, 15
        %vm202 = vcmp.lt.s32.totalorder %v200, 15
        %vm203 = vcmp.ge.s32.totalorder %v199, 1
        %vm204 = vcmp.ge.s32.totalorder %v200, 1
        %v205 = vld [vmem:[#allocation5] sm:$0xf]
        %v206 = vld [vmem:[%s148] sm:$0xff]
        %v208 = vcombine.high %v206, %v206
        %209 = vrot.lane.b32.xlu0 %v206, 17
        %v210 = vpop.permute.xlu0 %209
        %211 = vrot.lane.b32.xlu0 %v208, 17
        %v212 = vpop.permute.xlu0 %211
        %vm213 = vcmask 138240
        %v214 = vsel %vm213, %v210, %v212
        %v217 = vsel %vm213, 0.0, %v210
        %v218 = vsel %vm203, 1, 0
        %v219 = vsel %vm204, 1, 0
        %vm220 = vcmp.eq.s32.totalorder %v218, 1
        %vm221 = vcmp.eq.s32.totalorder %v219, 1
        %v222 = vsel %vm220, %v217, 0.0
        %v223 = vsel %vm221, %v214, 0.0
        %224 = vrot.lane.b32.xlu0 %v206, 16
        %v225 = vpop.permute.xlu0 %224
        %226 = vrot.lane.b32.xlu0 %v208, 16
        %v227 = vpop.permute.xlu0 %226
        %vm228 = vcmask 130048
        %v229 = vsel %vm228, %v225, %v227
        %v231 = vsel %vm228, 0.0, %v225
        %232 = vrot.lane.b32.xlu0 %v206, 15
        %v233 = vpop.permute.xlu0 %232
        %234 = vrot.lane.b32.xlu0 %v208, 15
        %v235 = vpop.permute.xlu0 %234
        %vm236 = vcmask 121856
        %v237 = vsel %vm236, %v233, %v235
        %v240 = vsel %vm236, 0.0, %v233
        %v241 = vsel %vm201, 1, 0
        %v242 = vsel %vm202, 1, 0
        %vm243 = vcmp.eq.s32.totalorder %v241, 1
        %vm244 = vcmp.eq.s32.totalorder %v242, 1
        %v245 = vsel %vm243, %v240, 0.0
        %v246 = vsel %vm244, %v237, 0.0
        %247 = vrot.lane.b32.xlu0 %v206, 1
        %v248 = vpop.permute.xlu0 %247
        %249 = vrot.lane.b32.xlu0 %v208, 1
        %v250 = vpop.permute.xlu0 %249
        %vm251 = vcmask 7168
        %v252 = vsel %vm251, %v248, %v250
        %v255 = vsel %vm251, 0.0, %v248
        %v256 = vsel %vm220, %v255, 0.0
        %v257 = vsel %vm221, %v252, 0.0
        %258 = vrot.lane.b32.xlu0 %v206, 127
        %v259 = vpop.permute.xlu0 %258
        %260 = vrot.lane.b32.xlu0 %v208, 127
        %v261 = vpop.permute.xlu0 %260
        %vm262 = vcmask 1039360
        %v263 = vsel %vm262, %v259, %v261
        %v266 = vsel %vm262, %v261, 0.0
        %v267 = vsel %vm243, %v263, 0.0
        %v268 = vsel %vm244, %v266, 0.0
        %269 = vrot.lane.b32.xlu0 %v206, 113
        %v270 = vpop.permute.xlu0 %269
        %271 = vrot.lane.b32.xlu0 %v208, 113
        %v272 = vpop.permute.xlu0 %271
        %vm273 = vcmask 924672
        %v274 = vsel %vm273, %v270, %v272
        %v277 = vsel %vm273, %v272, 0.0
        %v278 = vsel %vm220, %v274, 0.0
        %v279 = vsel %vm221, %v277, 0.0
        %280 = vrot.lane.b32.xlu0 %v206, 112
        %v281 = vpop.permute.xlu0 %280
        %282 = vrot.lane.b32.xlu0 %v208, 112
        %v283 = vpop.permute.xlu0 %282
        %vm284 = vcmask 916480
        %v285 = vsel %vm284, %v281, %v283
        %v287 = vsel %vm284, %v283, 0.0
        %288 = vrot.lane.b32.xlu0 %v206, 111
        %v289 = vpop.permute.xlu0 %288
        %290 = vrot.lane.b32.xlu0 %v208, 111
        %v291 = vpop.permute.xlu0 %290
        %vm292 = vcmask 908288
        %v293 = vsel %vm292, %v289, %v291
        %v296 = vsel %vm292, %v291, 0.0
        %v297 = vsel %vm243, %v293, 0.0
        %v298 = vsel %vm244, %v296, 0.0
        %v300 = vrot.slane %v231, 4
        %v301 = vrot.slane %v229, 4
        %v306 = vrot.slane %v256, 4
        %v307 = vrot.slane %v257, 4
        %v313 = vrot.slane %v267, 4
        %v314 = vrot.slane %v268, 4
        %v318 = vrot.slane %v285, 4
        %v319 = vrot.slane %v287, 4
        %vm322 = vcmask 1043456
        %v323 = vsel %vm322, %v222, %v300
        %v324 = vsel %vm322, %v223, %v301
        %v325 = vsel %vm322, %v245, %v306
        %v326 = vsel %vm322, %v246, %v307
        %v327 = vsel %vm322, %v206, %v313
        %v328 = vsel %vm322, %v208, %v314
        %v329 = vsel %vm322, %v278, %v318
        %v330 = vsel %vm322, %v279, %v319
        %v331 = vsel %vm322, %v297, 1.0
        %v332 = vsel %vm322, %v298, 1.0
        %v333 = vpack.c.bf16 %v325, %v323
        %v334 = vpack.c.bf16 %v326, %v324
        %v335 = vpack.c.bf16 %v329, %v327
        %v336 = vpack.c.bf16 %v330, %v328
        %v337 = vpack.c.bf16 %v331, %v331
        %v338 = vpack.c.bf16 %v332, %v332
        %vm339 = vcmask 326656
        %v341 = vsel %vm339, %v205, 0
        %v344 = vsel %vm322, %v337, 0
        %v347 = vsel %vm322, %v338, 0
        %349 = vmatprep.subr.bf16.mxu0 %v334
        %350 = vmatpush1.bf16.msra.mxu0 %v333
        %351 = vmatprep.subr.bf16.mxu0 %v336
        %352 = vmatpush1.bf16.msra.mxu0 %v335
        %353 = vmatprep.subr.bf16.mxu0 %v347
        %354 = vmatpush1.bf16.msra.mxu0 %v344
        %355 = vmatprep.subr.bf16.mxu0 0
        %356 = vmatpush1.bf16.msra.mxu0 0
        %357 = vmatprep.subr.bf16.mxu0 0
        %358 = vmatpush1.bf16.msra.mxu0 0
        %359 = vmatprep.subr.bf16.mxu0 0
        %360 = vmatpush1.bf16.msra.mxu0 0
        %361 = vmatprep.subr.bf16.mxu0 0
        %362 = vmatpush1.bf16.msra.mxu0 0
        %363 = vmatprep.subr.bf16.mxu0 0
        %364 = vmatpush1.bf16.msra.mxu0 0
        %365 = vmatprep.subr.bf16.mxu0 0
        %366 = vmatpush1.bf16.msra.mxu0 0
        %367 = vmatprep.subr.bf16.mxu0 0
        %368 = vmatpush1.bf16.msra.mxu0 0
        %369 = vmatprep.subr.bf16.mxu0 0
        %370 = vmatpush1.bf16.msra.mxu0 0
        %371 = vmatprep.subr.bf16.mxu0 0
        %372 = vmatpush1.bf16.msra.mxu0 0
        %373 = vmatprep.subr.bf16.mxu0 0
        %374 = vmatpush1.bf16.msra.mxu0 0
        %375 = vmatprep.subr.bf16.mxu0 0
        %376 = vmatpush1.bf16.msra.mxu0 0
        %377 = vmatprep.subr.bf16.mxu0 0
        %378 = vmatpush1.bf16.msra.mxu0 0
        %379 = vmatprep.subr.bf16.mxu0 0
        %380 = vmatpush1.bf16.msra.mxu0 0
        %381 = vmatprep.mubr.bf16.mxu0 0
        %382 = vmatmul.mubr.bf16.gmra.mrb[0].mxu0 %v341
        %v383 = vpop.f32.mrb[0].mxu0
        %v384 = vadd.f32 0.0, %v383
        %v385 = vpop.f32.mrb[0].mxu0
        %v386 = vadd.f32 0.0, %v385
        %v387 = vpop.f32.mrb[0].mxu0
        %v388 = vpop.f32.mrb[0].mxu0
        %389 = vdwg.mxu0
        %390 = vst [vmem:[%s172] sm:$0xff] %v384
        %391 = vst [vmem:[%s172 + $0x8] sm:$0xff] %v386
        %s392 = sand.u32 %s75, 1
        %s393 = scalar_lea.sflag [#allocation4], %s392
        %s394 = sand.u32 %s75, 1
        %s395 = smul.addr %s394, 16
        %s396 = scalar_lea.vmem [#allocation7], %s395
        // Predicated region
        $region37: #{tpu_custom_call.1} parent=27 // pred_check
          %p397 = pneg %p85
        $region38: #{tpu_custom_call.1} parent=27 // pred_check_branch
          %399 = sbr.rel (%p397) target = $region40
        $region39: #{tpu_custom_call.1} parent=27 // pred_region
          %s401 = ssub.s32 256, 256
          %402 = vsyncadd %s393, %s401
          %s403 = smul.addr %s20, 2
          %s404 = smul.addr %s403, 128
          %s405 = scalar_lea.hbm %s2, %s404
          %s407 = sshll.u32 %s396, 4
          %s408 = int_to_ptr.vmem [resolvable:$true] %s407
          %410 = dma.vmem_to_hbm [thread:$0]  %s408, 256, %s405, %s393
        $region40: #{tpu_custom_call.1} parent=27 // pred_fallthru
          _
      $region28: #{tpu_custom_call.1} parent=5 // pred_fallthru
        _
      %p411 = scmp.le.s32.totalorder 2, %s15
      // Predicated region
      $region41: #{tpu_custom_call.1} parent=5 // pred_check
        %p412 = pneg %p411
      $region42: #{tpu_custom_call.1} parent=5 // pred_check_branch
        %414 = sbr.rel (%p412) target = $region44
      $region43: #{tpu_custom_call.1} parent=5 // pred_region
        %s415 = ssub.s32 %s15, 2
        // Predicated region
        $region45: #{tpu_custom_call.1} parent=43 // pred_check
          %p416 = pneg %p91
        $region46: #{tpu_custom_call.1} parent=43 // pred_check_branch
          %418 = sbr.rel (%p416) target = $region48
        $region47: #{tpu_custom_call.1} parent=43 // pred_region
          %s419 = sand.u32 %s76, 1
          %s420 = scalar_lea.sflag [#allocation4], %s419
          %s421 = sand.u32 %s76, 1
          %s422 = smul.addr %s421, 16
          %s423 = scalar_lea.vmem [#allocation7], %s422
          %424 = dma.done %s420, 256
        $region48: #{tpu_custom_call.1} parent=43 // pred_fallthru
          _
      $region44: #{tpu_custom_call.1} parent=5 // pred_fallthru
        _
    $region6: #{tpu_custom_call.1} parent=1 // loop_footer
      %s19 = sadd.s32 1, %s15
    $region7: #{tpu_custom_call.1} parent=1 // loop_footer_branch
      %14 = sbr.rel target = $region3
    $region8: #{tpu_custom_call.1} parent=1 // loop_exit
      _
    %425 = vsyncpa [#allocation3], 1
    %s426 = scalar_lea.sflag [#allocation3], 1
    %427 = vsyncpa %s426, 1
    %428 = vsyncpa [#allocation6], 1
    %429 = vsyncpa [#allocation4], 1
    %s430 = scalar_lea.sflag [#allocation4], 1
    %431 = vsyncpa %s430, 1

</llo_original>
